<compile_context>
chip_gen: v7x
topology: tpu7x:2x2x1
jax: 0.10.0
libtpu: 0.0.40
codegen_flags: <defaults>
</compile_context>

<pallas_src>
import functools

import jax
import jax.numpy as jnp
from jax.experimental import pallas as pl
from jax.experimental.pallas import tpu as pltpu


def msfi_kernel(x_ref, a0_ref, b0_ref, mA_ref, gmat_ref, gmt_ref, o_ref,
                *, eps, c, inv_n, inv_nm1):
    x = x_ref[...]                                   # (Bt*C, HW) f32
    bc, _ = x.shape
    bt = bc // c
    half = c // 2

    # ---- single-pass group statistics, one fused MXU round trip each way ----
    s1 = jnp.sum(x, axis=1, keepdims=True)           # (Bt*C, 1)
    s2 = jnp.sum(x * x, axis=1, keepdims=True)       # (Bt*C, 1)
    s12 = jnp.concatenate([s1, s2], axis=1)          # (Bt*C, 2)

    gs = jnp.dot(gmat_ref[...], s12,
                 preferred_element_type=jnp.float32)          # (Bt*G, 2)
    gs1 = gs[:, 0:1]
    gs2 = gs[:, 1:2]
    mean_g = gs1 * inv_n
    # Single-pass unbiased (ddof=1, matches torch.std) variance; fine at f32 for
    # typical activations but can cancel badly when |mean| >> std.
    var_g = jnp.maximum((gs2 - gs1 * mean_g) * inv_nm1, 0.0)
    inv_std_g = 1.0 / (jnp.sqrt(var_g) + eps)        # exact recip on tiny tensor
    stats_g = jnp.concatenate([mean_g, inv_std_g], axis=1)    # (Bt*G, 2)
    stats_c = jnp.dot(gmt_ref[...], stats_g,
                      preferred_element_type=jnp.float32)     # (Bt*C, 2)
    mean_c = stats_c[:, 0:1]
    inv_std_c = stats_c[:, 1:2]

    # ---- folded per-channel scale/bias (a0 = 0.5*gamma*wg, b0 = 0.5*beta*wg) --
    a = a0_ref[...] * inv_std_c                      # (Bt*C, 1)
    b = b0_ref[...] - a * mean_c

    mA = mA_ref[...]                                 # (C, 1) = 0.5 * (wg > thresh)
    mB = 0.5 - mA                                    # = 0.5 * (wg <= thresh)
    mA_lo, mA_hi = mA[:half], mA[half:]
    mB_lo, mB_hi = mB[:half], mB[half:]

    # ---- reconstruct per batch element: no whole-slab temporary --------------
    for bi in range(bt):                             # static unroll; bt kept small
        lo = bi * c
        x_lo = x[lo:lo + half, :]
        x_hi = x[lo + half:lo + c, :]
        t_lo = (jnp.tanh(x_lo * a[lo:lo + half] + b[lo:lo + half]) + 1.0) * x_lo
        t_hi = (jnp.tanh(x_hi * a[lo + half:lo + c] + b[lo + half:lo + c]) + 1.0) * x_hi
        o_ref[lo:lo + half, :] = mA_lo * t_lo + mB_hi * t_hi
        o_ref[lo + half:lo + c, :] = mA_hi * t_hi + mB_lo * t_lo


def msfi_pallas(x, gamma, beta, *, group_num=16, gate_threshold=0.5, eps=1e-10):
    """x: (N, C, H, W) float32; gamma/beta: (C,) float32."""
    N, C, H, W = x.shape
    HW = H * W
    G = group_num
    assert C >= G and C % G == 0 and C % 2 == 0
    assert (C // 2) % 8 == 0, "half-channel split must be sublane aligned"
    assert HW % 128 == 0, "fused spatial axis must be lane-aligned"

    # Batch fusion: largest divisor of N with slab <= ~4 MiB.  Only force >=2
    # grid steps on multi-TensorCore chips (v7x); on v5e/v6e the grid is a
    # serial loop, so bigger slabs / fewer steps win on this mem-bound kernel.
    try:
        multi_tc = "v7" in jax.devices()[0].device_kind.lower()
    except Exception:  # pragma: no cover - device query is best-effort
        multi_tc = False
    slab_bytes = C * HW * 4
    target_bytes = 4 << 20
    bt = 1
    for cand in range(1, N + 1):
        if N % cand:
            continue
        if multi_tc and N >= 2 and N // cand < 2:
            continue
        if cand * slab_bytes <= target_bytes:
            bt = cand
    n_steps = N // bt

    x2 = x.reshape(N * C, HW).astype(jnp.float32)

    # parameter-only glue (host side): softmax over gamma, gate mask, folded
    # per-channel scale/bias (with the sigmoid->tanh 0.5 baked in), and the
    # 0/1 group-assignment matrices.
    gamma = gamma.astype(jnp.float32)
    beta = beta.astype(jnp.float32)
    wg = jax.nn.softmax(gamma)
    info = (wg > gate_threshold).astype(jnp.float32)
    a0 = jnp.tile((0.5 * gamma * wg).reshape(C, 1), (bt, 1))
    b0 = jnp.tile((0.5 * beta * wg).reshape(C, 1), (bt, 1))
    mA = (0.5 * info).reshape(C, 1)

    cg = C // G
    flat_ch = jnp.arange(bt * C)
    flat_group = (flat_ch // C) * G + (flat_ch % C) // cg
    gmat = (flat_group[None, :] == jnp.arange(bt * G)[:, None]).astype(jnp.float32)
    gmt = gmat.T

    n = cg * HW                                      # elements per group
    kernel = functools.partial(msfi_kernel, eps=eps, c=C,
                               inv_n=1.0 / n, inv_nm1=1.0 / (n - 1))

    # double-buffered x + out blocks plus live temporaries; raise the scoped
    # default but stay well under v7x's 64 MiB physical VMEM.
    vmem_limit = int(min(48 << 20, max(32 << 20, 8 * bt * slab_bytes + (4 << 20))))

    out2 = pl.pallas_call(
        kernel,
        out_shape=jax.ShapeDtypeStruct((N * C, HW), jnp.float32),
        grid=(n_steps,),
        in_specs=[
            pl.BlockSpec((bt * C, HW), lambda i: (i, 0)),      # x slab
            pl.BlockSpec((bt * C, 1), lambda i: (0, 0)),       # 0.5*gamma*wg (tiled)
            pl.BlockSpec((bt * C, 1), lambda i: (0, 0)),       # 0.5*beta*wg  (tiled)
            pl.BlockSpec((C, 1), lambda i: (0, 0)),            # 0.5*info mask
            pl.BlockSpec((bt * G, bt * C), lambda i: (0, 0)),  # group assignment
            pl.BlockSpec((bt * C, bt * G), lambda i: (0, 0)),  # its transpose
        ],
        out_specs=pl.BlockSpec((bt * C, HW), lambda i: (i, 0)),
        compiler_params=pltpu.CompilerParams(
            dimension_semantics=("parallel",),
            vmem_limit_bytes=vmem_limit),
    )(x2, a0, b0, mA, gmat, gmt)

    return out2.reshape(N, C, H, W)


def msfi_ref(x, gamma, beta, *, group_num=16, gate_threshold=0.5, eps=1e-10):
    """Pure-JAX reference mirroring the PyTorch module (two-pass stats)."""
    N, C, H, W = x.shape
    xg = x.reshape(N, group_num, -1)
    mean = xg.mean(axis=2, keepdims=True)
    std = jnp.std(xg, axis=2, keepdims=True, ddof=1)
    xn = (xg - mean) / (std + eps)
    xn = xn.reshape(N, C, H, W)
    gn_x = xn * gamma[None, :, None, None] + beta[None, :, None, None]
    wg = jax.nn.softmax(gamma)[None, :, None, None]
    rw = jax.nn.sigmoid(gn_x * wg)
    info = (wg > gate_threshold).astype(x.dtype)
    x1 = info * rw * x
    x2 = (1.0 - info) * rw * x
    half = C // 2
    return jnp.concatenate(
        [x1[:, :half] + x2[:, half:], x1[:, half:] + x2[:, :half]], axis=1)


if __name__ == "__main__":
    N, C, H, W = 2, 32, 16, 16
    GROUP_NUM = 16

    key = jax.random.PRNGKey(0)
    k_gamma, k_x = jax.random.split(key)

    # deterministic synthetic parameters (matches nn.Parameter shapes (C,1,1))
    gamma = jax.random.normal(k_gamma, (C,), dtype=jnp.float32)
    beta = jnp.zeros((C,), dtype=jnp.float32)
    x = jax.random.normal(k_x, (N, C, H, W), dtype=jnp.float32)

    out = msfi_pallas(x, gamma, beta, group_num=GROUP_NUM)
    out = jax.block_until_ready(out)

    ref = msfi_ref(x, gamma, beta, group_num=GROUP_NUM)
    assert out.shape == (N, C, H, W)
    assert jnp.max(jnp.abs(out - ref)) < 1e-5, "mismatch vs pure-JAX reference"

    print("KERNEL_OK")
</pallas_src>

<mosaic_0001>
module attributes {stable_mosaic.version = 11 : i64} {
  func.func @msfi_kernel(%arg0: i32, %arg1: memref<64x256xf32, #tpu.memory_space<vmem>>, %arg2: memref<64x1xf32, #tpu.memory_space<vmem>>, %arg3: memref<64x1xf32, #tpu.memory_space<vmem>>, %arg4: memref<32x1xf32, #tpu.memory_space<vmem>>, %arg5: memref<32x64xf32, #tpu.memory_space<vmem>>, %arg6: memref<64x32xf32, #tpu.memory_space<vmem>>, %arg7: memref<64x256xf32, #tpu.memory_space<vmem>>) attributes {dimension_semantics = [#tpu.dimension_semantics<parallel>], iteration_bounds = array<i64: 1>, scalar_prefetch = 0 : i64, scratch_operands = 0 : i64, tpu.core_type = #tpu.core_type<tc>, window_params = [{transform_indices = @transform_0, window_bounds = array<i64: 64, 256>}, {pipeline_mode = #tpu.pipeline_mode<synchronous>, transform_indices = @transform_1, window_bounds = array<i64: 64, 1>}, {pipeline_mode = #tpu.pipeline_mode<synchronous>, transform_indices = @transform_2, window_bounds = array<i64: 64, 1>}, {pipeline_mode = #tpu.pipeline_mode<synchronous>, transform_indices = @transform_3, window_bounds = array<i64: 32, 1>}, {pipeline_mode = #tpu.pipeline_mode<synchronous>, transform_indices = @transform_4, window_bounds = array<i64: 32, 64>}, {pipeline_mode = #tpu.pipeline_mode<synchronous>, transform_indices = @transform_5, window_bounds = array<i64: 64, 32>}, {transform_indices = @transform_6, window_bounds = array<i64: 64, 256>}]} {
    %c0 = arith.constant 0 : index
    %c0_0 = arith.constant 0 : index
    %0 = vector.load %arg1[%c0, %c0_0] : memref<64x256xf32, #tpu.memory_space<vmem>>, vector<64x256xf32>
    %cst = arith.constant dense<0.000000e+00> : vector<64xf32>
    %1 = vector.multi_reduction <add>, %0, %cst [1] : vector<64x256xf32> to vector<64xf32>
    %2 = vector.shape_cast %1 : vector<64xf32> to vector<64x1xf32>
    %3 = arith.mulf %0, %0 : vector<64x256xf32>
    %cst_1 = arith.constant dense<0.000000e+00> : vector<64xf32>
    %4 = vector.multi_reduction <add>, %3, %cst_1 [1] : vector<64x256xf32> to vector<64xf32>
    %5 = vector.shape_cast %4 : vector<64xf32> to vector<64x1xf32>
    %6 = tpu.concatenate %2, %5 in 1 : vector<64x1xf32>, vector<64x1xf32> -> vector<64x2xf32>
    %c0_2 = arith.constant 0 : index
    %c0_3 = arith.constant 0 : index
    %7 = vector.load %arg5[%c0_2, %c0_3] : memref<32x64xf32, #tpu.memory_space<vmem>>, vector<32x64xf32>
    %cst_4 = arith.constant dense<0.000000e+00> : vector<32x2xf32>
    %8 = tpu.matmul %7, %6, %cst_4 {dimension_numbers = #tpu.dot_dimension_numbers<[1], [0], [0], [1], [0, 0, 1, 1], [], []>} : vector<32x64xf32>, vector<64x2xf32>, vector<32x2xf32> -> vector<32x2xf32>
    %9 = vector.extract_strided_slice %8 {offsets = [0, 0], sizes = [32, 1], strides = [1, 1]} : vector<32x2xf32> to vector<32x1xf32>
    %10 = vector.extract_strided_slice %8 {offsets = [0, 1], sizes = [32, 1], strides = [1, 1]} : vector<32x2xf32> to vector<32x1xf32>
    %cst_5 = arith.constant 0.001953125 : f32
    %11 = vector.broadcast %cst_5 : f32 to vector<32x1xf32>
    %12 = arith.mulf %9, %11 : vector<32x1xf32>
    %13 = arith.mulf %9, %12 : vector<32x1xf32>
    %14 = arith.subf %10, %13 : vector<32x1xf32>
    %cst_6 = arith.constant 0.00195694715 : f32
    %15 = vector.broadcast %cst_6 : f32 to vector<32x1xf32>
    %16 = arith.mulf %14, %15 : vector<32x1xf32>
    %cst_7 = arith.constant 0.000000e+00 : f32
    %17 = vector.broadcast %cst_7 : f32 to vector<32x1xf32>
    %18 = arith.maximumf %16, %17 : vector<32x1xf32>
    %19 = math.sqrt %18 : vector<32x1xf32>
    %cst_8 = arith.constant 1.000000e-10 : f32
    %20 = vector.broadcast %cst_8 : f32 to vector<32x1xf32>
    %21 = arith.addf %19, %20 : vector<32x1xf32>
    %cst_9 = arith.constant 1.000000e+00 : f32
    %22 = vector.broadcast %cst_9 : f32 to vector<32x1xf32>
    %23 = arith.divf %22, %21 : vector<32x1xf32>
    %24 = tpu.concatenate %12, %23 in 1 : vector<32x1xf32>, vector<32x1xf32> -> vector<32x2xf32>
    %c0_10 = arith.constant 0 : index
    %c0_11 = arith.constant 0 : index
    %25 = vector.load %arg6[%c0_10, %c0_11] : memref<64x32xf32, #tpu.memory_space<vmem>>, vector<64x32xf32>
    %cst_12 = arith.constant dense<0.000000e+00> : vector<64x2xf32>
    %26 = tpu.matmul %25, %24, %cst_12 {dimension_numbers = #tpu.dot_dimension_numbers<[1], [0], [0], [1], [0, 0, 1, 1], [], []>} : vector<64x32xf32>, vector<32x2xf32>, vector<64x2xf32> -> vector<64x2xf32>
    %27 = vector.extract_strided_slice %26 {offsets = [0, 0], sizes = [64, 1], strides = [1, 1]} : vector<64x2xf32> to vector<64x1xf32>
    %28 = vector.extract_strided_slice %26 {offsets = [0, 1], sizes = [64, 1], strides = [1, 1]} : vector<64x2xf32> to vector<64x1xf32>
    %c0_13 = arith.constant 0 : index
    %c0_14 = arith.constant 0 : index
    %29 = vector.load %arg2[%c0_13, %c0_14] : memref<64x1xf32, #tpu.memory_space<vmem>>, vector<64x1xf32>
    %30 = arith.mulf %29, %28 : vector<64x1xf32>
    %c0_15 = arith.constant 0 : index
    %c0_16 = arith.constant 0 : index
    %31 = vector.load %arg3[%c0_15, %c0_16] : memref<64x1xf32, #tpu.memory_space<vmem>>, vector<64x1xf32>
    %32 = arith.mulf %30, %27 : vector<64x1xf32>
    %33 = arith.subf %31, %32 : vector<64x1xf32>
    %c0_17 = arith.constant 0 : index
    %c0_18 = arith.constant 0 : index
    %34 = vector.load %arg4[%c0_17, %c0_18] : memref<32x1xf32, #tpu.memory_space<vmem>>, vector<32x1xf32>
    %cst_19 = arith.constant 5.000000e-01 : f32
    %35 = vector.broadcast %cst_19 : f32 to vector<32x1xf32>
    %36 = arith.subf %35, %34 : vector<32x1xf32>
    %37 = vector.extract_strided_slice %34 {offsets = [0, 0], sizes = [16, 1], strides = [1, 1]} : vector<32x1xf32> to vector<16x1xf32>
    %38 = vector.extract_strided_slice %34 {offsets = [16, 0], sizes = [16, 1], strides = [1, 1]} : vector<32x1xf32> to vector<16x1xf32>
    %39 = vector.extract_strided_slice %36 {offsets = [0, 0], sizes = [16, 1], strides = [1, 1]} : vector<32x1xf32> to vector<16x1xf32>
    %40 = vector.extract_strided_slice %36 {offsets = [16, 0], sizes = [16, 1], strides = [1, 1]} : vector<32x1xf32> to vector<16x1xf32>
    %41 = vector.extract_strided_slice %0 {offsets = [0, 0], sizes = [16, 256], strides = [1, 1]} : vector<64x256xf32> to vector<16x256xf32>
    %42 = vector.extract_strided_slice %0 {offsets = [16, 0], sizes = [16, 256], strides = [1, 1]} : vector<64x256xf32> to vector<16x256xf32>
    %43 = vector.extract_strided_slice %30 {offsets = [0, 0], sizes = [16, 1], strides = [1, 1]} : vector<64x1xf32> to vector<16x1xf32>
    %44 = vector.broadcast %43 : vector<16x1xf32> to vector<16x256xf32>
    %45 = arith.mulf %41, %44 : vector<16x256xf32>
    %46 = vector.extract_strided_slice %33 {offsets = [0, 0], sizes = [16, 1], strides = [1, 1]} : vector<64x1xf32> to vector<16x1xf32>
    %47 = vector.broadcast %46 : vector<16x1xf32> to vector<16x256xf32>
    %48 = arith.addf %45, %47 : vector<16x256xf32>
    %49 = math.tanh %48 : vector<16x256xf32>
    %cst_20 = arith.constant 1.000000e+00 : f32
    %50 = vector.broadcast %cst_20 : f32 to vector<16x256xf32>
    %51 = arith.addf %49, %50 : vector<16x256xf32>
    %52 = arith.mulf %51, %41 : vector<16x256xf32>
    %53 = vector.extract_strided_slice %30 {offsets = [16, 0], sizes = [16, 1], strides = [1, 1]} : vector<64x1xf32> to vector<16x1xf32>
    %54 = vector.broadcast %53 : vector<16x1xf32> to vector<16x256xf32>
    %55 = arith.mulf %42, %54 : vector<16x256xf32>
    %56 = vector.extract_strided_slice %33 {offsets = [16, 0], sizes = [16, 1], strides = [1, 1]} : vector<64x1xf32> to vector<16x1xf32>
    %57 = vector.broadcast %56 : vector<16x1xf32> to vector<16x256xf32>
    %58 = arith.addf %55, %57 : vector<16x256xf32>
    %59 = math.tanh %58 : vector<16x256xf32>
    %cst_21 = arith.constant 1.000000e+00 : f32
    %60 = vector.broadcast %cst_21 : f32 to vector<16x256xf32>
    %61 = arith.addf %59, %60 : vector<16x256xf32>
    %62 = arith.mulf %61, %42 : vector<16x256xf32>
    %63 = vector.broadcast %37 : vector<16x1xf32> to vector<16x256xf32>
    %64 = arith.mulf %63, %52 : vector<16x256xf32>
    %65 = vector.broadcast %40 : vector<16x1xf32> to vector<16x256xf32>
    %66 = arith.mulf %65, %62 : vector<16x256xf32>
    %67 = arith.addf %64, %66 : vector<16x256xf32>
    %c0_22 = arith.constant 0 : index
    %c0_23 = arith.constant 0 : index
    %68 = vector.load %arg7[%c0_22, %c0_23] : memref<64x256xf32, #tpu.memory_space<vmem>>, vector<16x256xf32>
    tpu.vector_store %arg7[%c0_22, %c0_23], %67 {strides = array<i32>} : memref<64x256xf32, #tpu.memory_space<vmem>>, vector<16x256xf32>,
    %69 = vector.broadcast %38 : vector<16x1xf32> to vector<16x256xf32>
    %70 = arith.mulf %69, %62 : vector<16x256xf32>
    %71 = vector.broadcast %39 : vector<16x1xf32> to vector<16x256xf32>
    %72 = arith.mulf %71, %52 : vector<16x256xf32>
    %73 = arith.addf %70, %72 : vector<16x256xf32>
    %c16 = arith.constant 16 : index
    %c0_24 = arith.constant 0 : index
    %74 = vector.load %arg7[%c16, %c0_24] : memref<64x256xf32, #tpu.memory_space<vmem>>, vector<16x256xf32>
    tpu.vector_store %arg7[%c16, %c0_24], %73 {strides = array<i32>} : memref<64x256xf32, #tpu.memory_space<vmem>>, vector<16x256xf32>,
    %75 = vector.extract_strided_slice %0 {offsets = [32, 0], sizes = [16, 256], strides = [1, 1]} : vector<64x256xf32> to vector<16x256xf32>
    %76 = vector.extract_strided_slice %0 {offsets = [48, 0], sizes = [16, 256], strides = [1, 1]} : vector<64x256xf32> to vector<16x256xf32>
    %77 = vector.extract_strided_slice %30 {offsets = [32, 0], sizes = [16, 1], strides = [1, 1]} : vector<64x1xf32> to vector<16x1xf32>
    %78 = vector.broadcast %77 : vector<16x1xf32> to vector<16x256xf32>
    %79 = arith.mulf %75, %78 : vector<16x256xf32>
    %80 = vector.extract_strided_slice %33 {offsets = [32, 0], sizes = [16, 1], strides = [1, 1]} : vector<64x1xf32> to vector<16x1xf32>
    %81 = vector.broadcast %80 : vector<16x1xf32> to vector<16x256xf32>
    %82 = arith.addf %79, %81 : vector<16x256xf32>
    %83 = math.tanh %82 : vector<16x256xf32>
    %cst_25 = arith.constant 1.000000e+00 : f32
    %84 = vector.broadcast %cst_25 : f32 to vector<16x256xf32>
    %85 = arith.addf %83, %84 : vector<16x256xf32>
    %86 = arith.mulf %85, %75 : vector<16x256xf32>
    %87 = vector.extract_strided_slice %30 {offsets = [48, 0], sizes = [16, 1], strides = [1, 1]} : vector<64x1xf32> to vector<16x1xf32>
    %88 = vector.broadcast %87 : vector<16x1xf32> to vector<16x256xf32>
    %89 = arith.mulf %76, %88 : vector<16x256xf32>
    %90 = vector.extract_strided_slice %33 {offsets = [48, 0], sizes = [16, 1], strides = [1, 1]} : vector<64x1xf32> to vector<16x1xf32>
    %91 = vector.broadcast %90 : vector<16x1xf32> to vector<16x256xf32>
    %92 = arith.addf %89, %91 : vector<16x256xf32>
    %93 = math.tanh %92 : vector<16x256xf32>
    %cst_26 = arith.constant 1.000000e+00 : f32
    %94 = vector.broadcast %cst_26 : f32 to vector<16x256xf32>
    %95 = arith.addf %93, %94 : vector<16x256xf32>
    %96 = arith.mulf %95, %76 : vector<16x256xf32>
    %97 = vector.broadcast %37 : vector<16x1xf32> to vector<16x256xf32>
    %98 = arith.mulf %97, %86 : vector<16x256xf32>
    %99 = vector.broadcast %40 : vector<16x1xf32> to vector<16x256xf32>
    %100 = arith.mulf %99, %96 : vector<16x256xf32>
    %101 = arith.addf %98, %100 : vector<16x256xf32>
    %c32 = arith.constant 32 : index
    %c0_27 = arith.constant 0 : index
    %102 = vector.load %arg7[%c32, %c0_27] : memref<64x256xf32, #tpu.memory_space<vmem>>, vector<16x256xf32>
    tpu.vector_store %arg7[%c32, %c0_27], %101 {strides = array<i32>} : memref<64x256xf32, #tpu.memory_space<vmem>>, vector<16x256xf32>,
    %103 = vector.broadcast %38 : vector<16x1xf32> to vector<16x256xf32>
    %104 = arith.mulf %103, %96 : vector<16x256xf32>
    %105 = vector.broadcast %39 : vector<16x1xf32> to vector<16x256xf32>
    %106 = arith.mulf %105, %86 : vector<16x256xf32>
    %107 = arith.addf %104, %106 : vector<16x256xf32>
    %c48 = arith.constant 48 : index
    %c0_28 = arith.constant 0 : index
    %108 = vector.load %arg7[%c48, %c0_28] : memref<64x256xf32, #tpu.memory_space<vmem>>, vector<16x256xf32>
    tpu.vector_store %arg7[%c48, %c0_28], %107 {strides = array<i32>} : memref<64x256xf32, #tpu.memory_space<vmem>>, vector<16x256xf32>,
    return
  }
  func.func @transform_0(%arg0: i32) -> (i32, i32) {
    %c0_i32 = arith.constant 0 : i32
    %c0_i32_0 = arith.constant 0 : i32
    return %arg0, %c0_i32 : i32, i32
  }
  func.func @transform_1(%arg0: i32) -> (i32, i32) {
    %c0_i32 = arith.constant 0 : i32
    %c0_i32_0 = arith.constant 0 : i32
    %c0_i32_1 = arith.constant 0 : i32
    return %c0_i32, %c0_i32_0 : i32, i32
  }
  func.func @transform_2(%arg0: i32) -> (i32, i32) {
    %c0_i32 = arith.constant 0 : i32
    %c0_i32_0 = arith.constant 0 : i32
    %c0_i32_1 = arith.constant 0 : i32
    return %c0_i32, %c0_i32_0 : i32, i32
  }
  func.func @transform_3(%arg0: i32) -> (i32, i32) {
    %c0_i32 = arith.constant 0 : i32
    %c0_i32_0 = arith.constant 0 : i32
    %c0_i32_1 = arith.constant 0 : i32
    return %c0_i32, %c0_i32_0 : i32, i32
  }
  func.func @transform_4(%arg0: i32) -> (i32, i32) {
    %c0_i32 = arith.constant 0 : i32
    %c0_i32_0 = arith.constant 0 : i32
    %c0_i32_1 = arith.constant 0 : i32
    return %c0_i32, %c0_i32_0 : i32, i32
  }
  func.func @transform_5(%arg0: i32) -> (i32, i32) {
    %c0_i32 = arith.constant 0 : i32
    %c0_i32_0 = arith.constant 0 : i32
    %c0_i32_1 = arith.constant 0 : i32
    return %c0_i32, %c0_i32_0 : i32, i32
  }
  func.func @transform_6(%arg0: i32) -> (i32, i32) {
    %c0_i32 = arith.constant 0 : i32
    %c0_i32_0 = arith.constant 0 : i32
    return %arg0, %c0_i32 : i32, i32
  }
}

</mosaic_0001>

<llo_original>
// kernel: tpu_custom_call.1
$region0: #{tpu_custom_call.1}
  #allocation0 [shape = 'u32[]', space=smem, size = 0x4, offset = 0x4, fixed_abs, tag = 'smem constant byte address 0x4 - core index']
  #allocation1 [shape = 'u32[144,128]{1,0:T(1,128)}', space=vmem, size = 0x12000, scoped, tag = 'internal scratch']
  %s0 = inlined_call_operand.vmem [shape: f32[64,256], index: 0, kind: input, shape index: {}]
  %s1 = inlined_call_operand.vmem [shape: f32[64,1], index: 1, kind: input, shape index: {}]
  %s2 = inlined_call_operand.vmem [shape: f32[64,1], index: 2, kind: input, shape index: {}]
  %s3 = inlined_call_operand.vmem [shape: f32[32,1], index: 3, kind: input, shape index: {}]
  %s4 = inlined_call_operand.vmem [shape: f32[32,64], index: 4, kind: input, shape index: {}]
  %s5 = inlined_call_operand.vmem [shape: f32[64,32], index: 5, kind: input, shape index: {}]
  %s6 = inlined_call_operand.hbm [shape: f32[64,256], index: 6, kind: output, shape index: {}]
  %s7 = sld [smem:[#allocation0]]
  $region34: #{tpu_custom_call.1} parent=0
    _
  %s9 = ssub.s32 1, %s7
  %s10 = scalar_select 0, %s9, %s7
  $region1: #{tpu_custom_call.1} parent=0
    #allocation2 [shape = 'u8[65536]{0}', space=vmem, size = 0x10000, scoped, tag = 'output window, operand 0, single buffered']
    #allocation3 [shape = 's32[1]{0}', space=sflag, size = 0x4, scoped, tag = 'scoped memory for tpu_custom_call.1']
    %11 = vsyncpa [#allocation3], 0
    // Predicated region
    $region2: #{tpu_custom_call.1} parent=1 // pred_check
      _
    $region3: #{tpu_custom_call.1} parent=1 // pred_check_branch
      %13 = sbr.rel (0) target = $region5
    $region4: #{tpu_custom_call.1} parent=1 // pred_region
      _
    $region5: #{tpu_custom_call.1} parent=1 // pred_fallthru
      _
    // Predicated region
    $region6: #{tpu_custom_call.1} parent=1 // pred_check
      _
    $region7: #{tpu_custom_call.1} parent=1 // pred_check_branch
      %15 = sbr.rel (0) target = $region9
    $region8: #{tpu_custom_call.1} parent=1 // pred_region
      _
    $region9: #{tpu_custom_call.1} parent=1 // pred_fallthru
      _
    // Predicated region
    $region10: #{tpu_custom_call.1} parent=1 // pred_check
      _
    $region11: #{tpu_custom_call.1} parent=1 // pred_check_branch
      %17 = sbr.rel (0) target = $region13
    $region12: #{tpu_custom_call.1} parent=1 // pred_region
      _
    $region13: #{tpu_custom_call.1} parent=1 // pred_fallthru
      _
    // Predicated region
    $region14: #{tpu_custom_call.1} parent=1 // pred_check
      _
    $region15: #{tpu_custom_call.1} parent=1 // pred_check_branch
      %19 = sbr.rel (0) target = $region17
    $region16: #{tpu_custom_call.1} parent=1 // pred_region
      _
    $region17: #{tpu_custom_call.1} parent=1 // pred_fallthru
      _
    // Predicated region
    $region18: #{tpu_custom_call.1} parent=1 // pred_check
      _
    $region19: #{tpu_custom_call.1} parent=1 // pred_check_branch
      %21 = sbr.rel (0) target = $region21
    $region20: #{tpu_custom_call.1} parent=1 // pred_region
      _
    $region21: #{tpu_custom_call.1} parent=1 // pred_fallthru
      _
    // Predicated region
    $region22: #{tpu_custom_call.1} parent=1 // pred_check
      _
    $region23: #{tpu_custom_call.1} parent=1 // pred_check_branch
      %23 = sbr.rel (0) target = $region25
    $region24: #{tpu_custom_call.1} parent=1 // pred_region
      _
    $region25: #{tpu_custom_call.1} parent=1 // pred_fallthru
      _
    %v24 = vld [vmem:[%s0] sm:$0xff]
    %v25 = vld [vmem:[%s0 + $0x8] sm:$0xff]
    %v26 = vld [vmem:[%s0 + $0x10] sm:$0xff]
    %v27 = vld [vmem:[%s0 + $0x18] sm:$0xff]
    %v28 = vld [vmem:[%s0 + $0x20] sm:$0xff]
    %v29 = vld [vmem:[%s0 + $0x28] sm:$0xff]
    %v30 = vld [vmem:[%s0 + $0x30] sm:$0xff]
    %v31 = vld [vmem:[%s0 + $0x38] sm:$0xff]
    %v32 = vld [vmem:[%s0 + $0x40] sm:$0xff]
    %v33 = vld [vmem:[%s0 + $0x48] sm:$0xff]
    %v34 = vld [vmem:[%s0 + $0x50] sm:$0xff]
    %v35 = vld [vmem:[%s0 + $0x58] sm:$0xff]
    %v36 = vld [vmem:[%s0 + $0x60] sm:$0xff]
    %v37 = vld [vmem:[%s0 + $0x68] sm:$0xff]
    %v38 = vld [vmem:[%s0 + $0x70] sm:$0xff]
    %v39 = vld [vmem:[%s0 + $0x78] sm:$0xff]
    %v40 = vadd.f32 %v24, %v25
    %41 = vadd.xlane.f32.xlu0 %v40
    %v42 = vpop.xlane.xlu0 %41
    %v43 = vadd.f32 %v26, %v27
    %44 = vadd.xlane.f32.xlu0 %v43
    %v45 = vpop.xlane.xlu0 %44
    %v46 = vadd.f32 %v28, %v29
    %47 = vadd.xlane.f32.xlu0 %v46
    %v48 = vpop.xlane.xlu0 %47
    %v49 = vadd.f32 %v30, %v31
    %50 = vadd.xlane.f32.xlu0 %v49
    %v51 = vpop.xlane.xlu0 %50
    %v52 = vadd.f32 %v32, %v33
    %53 = vadd.xlane.f32.xlu0 %v52
    %v54 = vpop.xlane.xlu0 %53
    %v55 = vadd.f32 %v34, %v35
    %56 = vadd.xlane.f32.xlu0 %v55
    %v57 = vpop.xlane.xlu0 %56
    %v58 = vadd.f32 %v36, %v37
    %59 = vadd.xlane.f32.xlu0 %v58
    %v60 = vpop.xlane.xlu0 %59
    %v61 = vadd.f32 %v38, %v39
    %62 = vadd.xlane.f32.xlu0 %v61
    %v63 = vpop.xlane.xlu0 %62
    %v64 = vmul.f32 %v24, %v24
    %v65 = vmul.f32 %v25, %v25
    %v66 = vmul.f32 %v26, %v26
    %v67 = vmul.f32 %v27, %v27
    %v68 = vmul.f32 %v28, %v28
    %v69 = vmul.f32 %v29, %v29
    %v70 = vmul.f32 %v30, %v30
    %v71 = vmul.f32 %v31, %v31
    %v72 = vmul.f32 %v32, %v32
    %v73 = vmul.f32 %v33, %v33
    %v74 = vmul.f32 %v34, %v34
    %v75 = vmul.f32 %v35, %v35
    %v76 = vmul.f32 %v36, %v36
    %v77 = vmul.f32 %v37, %v37
    %v78 = vmul.f32 %v38, %v38
    %v79 = vmul.f32 %v39, %v39
    %v80 = vadd.f32 %v64, %v65
    %81 = vadd.xlane.f32.xlu0 %v80
    %v82 = vpop.xlane.xlu0 %81
    %v83 = vadd.f32 %v66, %v67
    %84 = vadd.xlane.f32.xlu0 %v83
    %v85 = vpop.xlane.xlu0 %84
    %v86 = vadd.f32 %v68, %v69
    %87 = vadd.xlane.f32.xlu0 %v86
    %v88 = vpop.xlane.xlu0 %87
    %v89 = vadd.f32 %v70, %v71
    %90 = vadd.xlane.f32.xlu0 %v89
    %v91 = vpop.xlane.xlu0 %90
    %v92 = vadd.f32 %v72, %v73
    %93 = vadd.xlane.f32.xlu0 %v92
    %v94 = vpop.xlane.xlu0 %93
    %v95 = vadd.f32 %v74, %v75
    %96 = vadd.xlane.f32.xlu0 %v95
    %v97 = vpop.xlane.xlu0 %96
    %v98 = vadd.f32 %v76, %v77
    %99 = vadd.xlane.f32.xlu0 %v98
    %v100 = vpop.xlane.xlu0 %99
    %v101 = vadd.f32 %v78, %v79
    %102 = vadd.xlane.f32.xlu0 %v101
    %v103 = vpop.xlane.xlu0 %102
    %vm104 = vcmask 7168
    %v105 = vsel %vm104, %v42, %v82
    %v106 = vsel %vm104, %v45, %v85
    %v107 = vsel %vm104, %v48, %v88
    %v108 = vsel %vm104, %v51, %v91
    %v109 = vsel %vm104, %v54, %v94
    %v110 = vsel %vm104, %v57, %v97
    %v111 = vsel %vm104, %v60, %v100
    %v112 = vsel %vm104, %v63, %v103
    %v113 = vld [vmem:[%s4] sm:$0xff]
    %v114 = vld [vmem:[%s4 + $0x8] sm:$0xff]
    %v115 = vld [vmem:[%s4 + $0x10] sm:$0xff]
    %v116 = vld [vmem:[%s4 + $0x18] sm:$0xff]
    %vm117 = vcmask 523264
    %v119 = vsel %vm117, %v113, 0
    %v122 = vsel %vm117, %v114, 0
    %v125 = vsel %vm117, %v115, 0
    %v128 = vsel %vm117, %v116, 0
    %130 = vmatprep.subr.mxu0 0.0
    %131 = vmatpush1.msra.mxu0 %v105
    %132 = vmatprep.subr.mxu0 0.0
    %133 = vmatpush1.msra.mxu0 %v106
    %134 = vmatprep.subr.mxu0 0.0
    %135 = vmatpush1.msra.mxu0 %v107
    %136 = vmatprep.subr.mxu0 0.0
    %137 = vmatpush1.msra.mxu0 %v108
    %138 = vmatprep.subr.mxu0 0.0
    %139 = vmatpush1.msra.mxu0 %v109
    %140 = vmatprep.subr.mxu0 0.0
    %141 = vmatpush1.msra.mxu0 %v110
    %142 = vmatprep.subr.mxu0 0.0
    %143 = vmatpush1.msra.mxu0 %v111
    %144 = vmatprep.subr.mxu0 0.0
    %145 = vmatpush1.msra.mxu0 %v112
    %146 = vmatprep.subr.mxu0 0.0
    %147 = vmatpush1.msra.mxu0 0.0
    %148 = vmatprep.subr.mxu0 0.0
    %149 = vmatpush1.msra.mxu0 0.0
    %150 = vmatprep.subr.mxu0 0.0
    %151 = vmatpush1.msra.mxu0 0.0
    %152 = vmatprep.subr.mxu0 0.0
    %153 = vmatpush1.msra.mxu0 0.0
    %154 = vmatprep.subr.mxu0 0.0
    %155 = vmatpush1.msra.mxu0 0.0
    %156 = vmatprep.subr.mxu0 0.0
    %157 = vmatpush1.msra.mxu0 0.0
    %158 = vmatprep.subr.mxu0 0.0
    %159 = vmatpush1.msra.mxu0 0.0
    %160 = vmatprep.subr.mxu0 0.0
    %161 = vmatpush1.msra.mxu0 0.0
    %162 = vmatprep.subr.mxu0 0.0
    %163 = vmatpush1.msra.mxu0 0.0
    %164 = vmatprep.subr.mxu0 0.0
    %165 = vmatpush1.msra.mxu0 0.0
    %166 = vmatprep.subr.mxu0 0.0
    %167 = vmatpush1.msra.mxu0 0.0
    %168 = vmatprep.subr.mxu0 0.0
    %169 = vmatpush1.msra.mxu0 0.0
    %170 = vmatprep.subr.mxu0 0.0
    %171 = vmatpush1.msra.mxu0 0.0
    %172 = vmatprep.subr.mxu0 0.0
    %173 = vmatpush1.msra.mxu0 0.0
    %174 = vmatprep.subr.mxu0 0.0
    %175 = vmatpush1.msra.mxu0 0.0
    %176 = vmatprep.subr.mxu0 0.0
    %177 = vmatpush1.msra.mxu0 0.0
    %178 = vmatprep.subr.mxu0 0.0
    %179 = vmatpush1.msra.mxu0 0.0
    %180 = vmatprep.subr.mxu0 0.0
    %181 = vmatpush1.msra.mxu0 0.0
    %182 = vmatprep.subr.mxu0 0.0
    %183 = vmatpush1.msra.mxu0 0.0
    %184 = vmatprep.subr.mxu0 0.0
    %185 = vmatpush1.msra.mxu0 0.0
    %186 = vmatprep.subr.mxu0 0.0
    %187 = vmatpush1.msra.mxu0 0.0
    %188 = vmatprep.subr.mxu0 0.0
    %189 = vmatpush1.msra.mxu0 0.0
    %190 = vmatprep.subr.mxu0 0.0
    %191 = vmatpush1.msra.mxu0 0.0
    %192 = vmatprep.subr.mxu0 0.0
    %193 = vmatpush1.msra.mxu0 0.0
    %194 = vmatprep.mubr.f32.mxu0 0.0
    %195 = vmatmul.mubr.f32.gmra.mrb[0].mxu0 %v119
    %v196 = vpop.f32.mrb[0].mxu0
    %v197 = vadd.f32 0.0, %v196
    %v198 = vpop.f32.mrb[0].mxu0
    %199 = vmatprep.mubr.f32.mxu0 0.0
    %200 = vmatmul.mubr.f32.gmra.mrb[0].mxu0 %v122
    %v201 = vpop.f32.mrb[0].mxu0
    %v202 = vadd.f32 0.0, %v201
    %v203 = vpop.f32.mrb[0].mxu0
    %204 = vmatprep.mubr.f32.mxu0 0.0
    %205 = vmatmul.mubr.f32.gmra.mrb[0].mxu0 %v125
    %v206 = vpop.f32.mrb[0].mxu0
    %v207 = vadd.f32 0.0, %v206
    %v208 = vpop.f32.mrb[0].mxu0
    %209 = vmatprep.mubr.f32.mxu0 0.0
    %210 = vmatmul.mubr.f32.gmra.mrb[0].mxu0 %v128
    %v211 = vpop.f32.mrb[0].mxu0
    %v212 = vadd.f32 0.0, %v211
    %v213 = vpop.f32.mrb[0].mxu0
    %214 = vdwg.mxu0
    %v215 = vmul.f32 %v197, 0.001953125
    %v216 = vmul.f32 %v202, 0.001953125
    %v217 = vmul.f32 %v207, 0.001953125
    %v218 = vmul.f32 %v212, 0.001953125
    %v219 = vmul.f32 %v197, %v215
    %v220 = vmul.f32 %v202, %v216
    %v221 = vmul.f32 %v207, %v217
    %v222 = vmul.f32 %v212, %v218
    %227 = vrot.lane.b32.xlu0 %v219, 1
    %v228 = vpop.permute.xlu0 %227
    %229 = vrot.lane.b32.xlu0 %v220, 1
    %v230 = vpop.permute.xlu0 %229
    %231 = vrot.lane.b32.xlu0 %v221, 1
    %v232 = vpop.permute.xlu0 %231
    %233 = vrot.lane.b32.xlu0 %v222, 1
    %v234 = vpop.permute.xlu0 %233
    %v239 = vsub.f32 %v197, %v228
    %v240 = vsub.f32 %v202, %v230
    %v241 = vsub.f32 %v207, %v232
    %v242 = vsub.f32 %v212, %v234
    %v243 = vmul.f32 %v239, 0.0019569471
    %v244 = vmul.f32 %v240, 0.0019569471
    %v245 = vmul.f32 %v241, 0.0019569471
    %v246 = vmul.f32 %v242, 0.0019569471
    %v247 = vmax.f32 %v243, 0.0
    %v248 = vmax.f32 %v244, 0.0
    %v249 = vmax.f32 %v245, 0.0
    %v250 = vmax.f32 %v246, 0.0
    %v251 = vrsqrt.pop %v247
    %v252 = vmul.f32 %v247, %v251
    %vm253 = vcmp.eq.f32.partialorder %v247, inf
    %v254 = vsel %vm253, %v247, %v252
    %vm255 = vcmp.eq.f32.partialorder %v247, 0.0
    %v256 = vand.u32 %v247, 2147483648
    %v257 = vsel %vm255, %v256, %v254
    %v258 = vrsqrt.pop %v248
    %v259 = vmul.f32 %v248, %v258
    %vm260 = vcmp.eq.f32.partialorder %v248, inf
    %v261 = vsel %vm260, %v248, %v259
    %vm262 = vcmp.eq.f32.partialorder %v248, 0.0
    %v263 = vand.u32 %v248, 2147483648
    %v264 = vsel %vm262, %v263, %v261
    %v265 = vrsqrt.pop %v249
    %v266 = vmul.f32 %v249, %v265
    %vm267 = vcmp.eq.f32.partialorder %v249, inf
    %v268 = vsel %vm267, %v249, %v266
    %vm269 = vcmp.eq.f32.partialorder %v249, 0.0
    %v270 = vand.u32 %v249, 2147483648
    %v271 = vsel %vm269, %v270, %v268
    %v272 = vrsqrt.pop %v250
    %v273 = vmul.f32 %v250, %v272
    %vm274 = vcmp.eq.f32.partialorder %v250, inf
    %v275 = vsel %vm274, %v250, %v273
    %vm276 = vcmp.eq.f32.partialorder %v250, 0.0
    %v277 = vand.u32 %v250, 2147483648
    %v278 = vsel %vm276, %v277, %v275
    %v279 = vadd.f32 %v257, 1e-10
    %v280 = vadd.f32 %v264, 1e-10
    %v281 = vadd.f32 %v271, 1e-10
    %v282 = vadd.f32 %v278, 1e-10
    %v283 = vrcp.pop %v279
    %v284 = vmul.f32 1.0, %v283
    %v285 = vrcp.pop %v280
    %v286 = vmul.f32 1.0, %v285
    %v287 = vrcp.pop %v281
    %v288 = vmul.f32 1.0, %v287
    %v289 = vrcp.pop %v282
    %v290 = vmul.f32 1.0, %v289
    %v291 = vsel %vm104, %v215, %v284
    %v292 = vsel %vm104, %v216, %v286
    %v293 = vsel %vm104, %v217, %v288
    %v294 = vsel %vm104, %v218, %v290
    %v295 = vld [vmem:[%s5] sm:$0xff]
    %v296 = vld [vmem:[%s5 + $0x8] sm:$0xff]
    %v297 = vld [vmem:[%s5 + $0x10] sm:$0xff]
    %v298 = vld [vmem:[%s5 + $0x18] sm:$0xff]
    %v299 = vld [vmem:[%s5 + $0x20] sm:$0xff]
    %v300 = vld [vmem:[%s5 + $0x28] sm:$0xff]
    %v301 = vld [vmem:[%s5 + $0x30] sm:$0xff]
    %v302 = vld [vmem:[%s5 + $0x38] sm:$0xff]
    %vm303 = vcmask 261120
    %v305 = vsel %vm303, %v295, 0
    %v308 = vsel %vm303, %v296, 0
    %v311 = vsel %vm303, %v297, 0
    %v314 = vsel %vm303, %v298, 0
    %v317 = vsel %vm303, %v299, 0
    %v320 = vsel %vm303, %v300, 0
    %v323 = vsel %vm303, %v301, 0
    %v326 = vsel %vm303, %v302, 0
    %328 = vmatprep.subr.mxu0 0.0
    %329 = vmatpush1.msra.mxu0 %v291
    %330 = vmatprep.subr.mxu0 0.0
    %331 = vmatpush1.msra.mxu0 %v292
    %332 = vmatprep.subr.mxu0 0.0
    %333 = vmatpush1.msra.mxu0 %v293
    %334 = vmatprep.subr.mxu0 0.0
    %335 = vmatpush1.msra.mxu0 %v294
    %336 = vmatprep.subr.mxu0 0.0
    %337 = vmatpush1.msra.mxu0 0.0
    %338 = vmatprep.subr.mxu0 0.0
    %339 = vmatpush1.msra.mxu0 0.0
    %340 = vmatprep.subr.mxu0 0.0
    %341 = vmatpush1.msra.mxu0 0.0
    %342 = vmatprep.subr.mxu0 0.0
    %343 = vmatpush1.msra.mxu0 0.0
    %344 = vmatprep.subr.mxu0 0.0
    %345 = vmatpush1.msra.mxu0 0.0
    %346 = vmatprep.subr.mxu0 0.0
    %347 = vmatpush1.msra.mxu0 0.0
    %348 = vmatprep.subr.mxu0 0.0
    %349 = vmatpush1.msra.mxu0 0.0
    %350 = vmatprep.subr.mxu0 0.0
    %351 = vmatpush1.msra.mxu0 0.0
    %352 = vmatprep.subr.mxu0 0.0
    %353 = vmatpush1.msra.mxu0 0.0
    %354 = vmatprep.subr.mxu0 0.0
    %355 = vmatpush1.msra.mxu0 0.0
    %356 = vmatprep.subr.mxu0 0.0
    %357 = vmatpush1.msra.mxu0 0.0
    %358 = vmatprep.subr.mxu0 0.0
    %359 = vmatpush1.msra.mxu0 0.0
    %360 = vmatprep.subr.mxu0 0.0
    %361 = vmatpush1.msra.mxu0 0.0
    %362 = vmatprep.subr.mxu0 0.0
    %363 = vmatpush1.msra.mxu0 0.0
    %364 = vmatprep.subr.mxu0 0.0
    %365 = vmatpush1.msra.mxu0 0.0
    %366 = vmatprep.subr.mxu0 0.0
    %367 = vmatpush1.msra.mxu0 0.0
    %368 = vmatprep.subr.mxu0 0.0
    %369 = vmatpush1.msra.mxu0 0.0
    %370 = vmatprep.subr.mxu0 0.0
    %371 = vmatpush1.msra.mxu0 0.0
    %372 = vmatprep.subr.mxu0 0.0
    %373 = vmatpush1.msra.mxu0 0.0
    %374 = vmatprep.subr.mxu0 0.0
    %375 = vmatpush1.msra.mxu0 0.0
    %376 = vmatprep.subr.mxu0 0.0
    %377 = vmatpush1.msra.mxu0 0.0
    %378 = vmatprep.subr.mxu0 0.0
    %379 = vmatpush1.msra.mxu0 0.0
    %380 = vmatprep.subr.mxu0 0.0
    %381 = vmatpush1.msra.mxu0 0.0
    %382 = vmatprep.subr.mxu0 0.0
    %383 = vmatpush1.msra.mxu0 0.0
    %384 = vmatprep.subr.mxu0 0.0
    %385 = vmatpush1.msra.mxu0 0.0
    %386 = vmatprep.subr.mxu0 0.0
    %387 = vmatpush1.msra.mxu0 0.0
    %388 = vmatprep.subr.mxu0 0.0
    %389 = vmatpush1.msra.mxu0 0.0
    %390 = vmatprep.subr.mxu0 0.0
    %391 = vmatpush1.msra.mxu0 0.0
    %392 = vmatprep.mubr.f32.mxu0 0.0
    %393 = vmatmul.mubr.f32.gmra.mrb[0].mxu0 %v305
    %v394 = vpop.f32.mrb[0].mxu0
    %v395 = vadd.f32 0.0, %v394
    %v396 = vpop.f32.mrb[0].mxu0
    %397 = vmatprep.mubr.f32.mxu0 0.0
    %398 = vmatmul.mubr.f32.gmra.mrb[0].mxu0 %v308
    %v399 = vpop.f32.mrb[0].mxu0
    %v400 = vadd.f32 0.0, %v399
    %v401 = vpop.f32.mrb[0].mxu0
    %402 = vmatprep.mubr.f32.mxu0 0.0
    %403 = vmatmul.mubr.f32.gmra.mrb[0].mxu0 %v311
    %v404 = vpop.f32.mrb[0].mxu0
    %v405 = vadd.f32 0.0, %v404
    %v406 = vpop.f32.mrb[0].mxu0
    %407 = vmatprep.mubr.f32.mxu0 0.0
    %408 = vmatmul.mubr.f32.gmra.mrb[0].mxu0 %v314
    %v409 = vpop.f32.mrb[0].mxu0
    %v410 = vadd.f32 0.0, %v409
    %v411 = vpop.f32.mrb[0].mxu0
    %412 = vmatprep.mubr.f32.mxu0 0.0
    %413 = vmatmul.mubr.f32.gmra.mrb[0].mxu0 %v317
    %v414 = vpop.f32.mrb[0].mxu0
    %v415 = vadd.f32 0.0, %v414
    %v416 = vpop.f32.mrb[0].mxu0
    %417 = vmatprep.mubr.f32.mxu0 0.0
    %418 = vmatmul.mubr.f32.gmra.mrb[0].mxu0 %v320
    %v419 = vpop.f32.mrb[0].mxu0
    %v420 = vadd.f32 0.0, %v419
    %v421 = vpop.f32.mrb[0].mxu0
    %422 = vmatprep.mubr.f32.mxu0 0.0
    %423 = vmatmul.mubr.f32.gmra.mrb[0].mxu0 %v323
    %v424 = vpop.f32.mrb[0].mxu0
    %v425 = vadd.f32 0.0, %v424
    %v426 = vpop.f32.mrb[0].mxu0
    %427 = vmatprep.mubr.f32.mxu0 0.0
    %428 = vmatmul.mubr.f32.gmra.mrb[0].mxu0 %v326
    %v429 = vpop.f32.mrb[0].mxu0
    %v430 = vadd.f32 0.0, %v429
    %v431 = vpop.f32.mrb[0].mxu0
    %432 = vdwg.mxu0
    %v433 = vld [vmem:[%s1] sm:$0xff]
    %v434 = vld [vmem:[%s1 + $0x8] sm:$0xff]
    %v435 = vld [vmem:[%s1 + $0x10] sm:$0xff]
    %v436 = vld [vmem:[%s1 + $0x18] sm:$0xff]
    %v437 = vld [vmem:[%s1 + $0x20] sm:$0xff]
    %v438 = vld [vmem:[%s1 + $0x28] sm:$0xff]
    %v439 = vld [vmem:[%s1 + $0x30] sm:$0xff]
    %v440 = vld [vmem:[%s1 + $0x38] sm:$0xff]
    %449 = vrot.lane.b32.xlu0 %v395, 127
    %v450 = vpop.permute.xlu0 %449
    %451 = vrot.lane.b32.xlu0 %v400, 127
    %v452 = vpop.permute.xlu0 %451
    %453 = vrot.lane.b32.xlu0 %v405, 127
    %v454 = vpop.permute.xlu0 %453
    %455 = vrot.lane.b32.xlu0 %v410, 127
    %v456 = vpop.permute.xlu0 %455
    %457 = vrot.lane.b32.xlu0 %v415, 127
    %v458 = vpop.permute.xlu0 %457
    %459 = vrot.lane.b32.xlu0 %v420, 127
    %v460 = vpop.permute.xlu0 %459
    %461 = vrot.lane.b32.xlu0 %v425, 127
    %v462 = vpop.permute.xlu0 %461
    %463 = vrot.lane.b32.xlu0 %v430, 127
    %v464 = vpop.permute.xlu0 %463
    %v473 = vmul.f32 %v433, %v450
    %v474 = vmul.f32 %v434, %v452
    %v475 = vmul.f32 %v435, %v454
    %v476 = vmul.f32 %v436, %v456
    %v477 = vmul.f32 %v437, %v458
    %v478 = vmul.f32 %v438, %v460
    %v479 = vmul.f32 %v439, %v462
    %v480 = vmul.f32 %v440, %v464
    %v481 = vld [vmem:[%s2] sm:$0xff]
    %v482 = vld [vmem:[%s2 + $0x8] sm:$0xff]
    %v483 = vld [vmem:[%s2 + $0x10] sm:$0xff]
    %v484 = vld [vmem:[%s2 + $0x18] sm:$0xff]
    %v485 = vld [vmem:[%s2 + $0x20] sm:$0xff]
    %v486 = vld [vmem:[%s2 + $0x28] sm:$0xff]
    %v487 = vld [vmem:[%s2 + $0x30] sm:$0xff]
    %v488 = vld [vmem:[%s2 + $0x38] sm:$0xff]
    %v489 = vmul.f32 %v473, %v395
    %v490 = vmul.f32 %v474, %v400
    %v491 = vmul.f32 %v475, %v405
    %v492 = vmul.f32 %v476, %v410
    %v493 = vmul.f32 %v477, %v415
    %v494 = vmul.f32 %v478, %v420
    %v495 = vmul.f32 %v479, %v425
    %v496 = vmul.f32 %v480, %v430
    %v497 = vsub.f32 %v481, %v489
    %v498 = vsub.f32 %v482, %v490
    %v499 = vsub.f32 %v483, %v491
    %v500 = vsub.f32 %v484, %v492
    %v501 = vsub.f32 %v485, %v493
    %v502 = vsub.f32 %v486, %v494
    %v503 = vsub.f32 %v487, %v495
    %v504 = vsub.f32 %v488, %v496
    %v505 = vld [vmem:[%s3] sm:$0xff]
    %v506 = vld [vmem:[%s3 + $0x8] sm:$0xff]
    %v507 = vld [vmem:[%s3 + $0x10] sm:$0xff]
    %v508 = vld [vmem:[%s3 + $0x18] sm:$0xff]
    %v509 = vsub.f32 0.5, %v505
    %v510 = vsub.f32 0.5, %v506
    %v511 = vsub.f32 0.5, %v507
    %v512 = vsub.f32 0.5, %v508
    %514 = vset.pattern.permute.xlu0 0
    %515 = vperm.xlu0 %514, %v473
    %v516 = vpop.permute.xlu0 %515
    %519 = vset.pattern.permute.xlu0 0
    %520 = vperm.xlu0 %519, %v474
    %v521 = vpop.permute.xlu0 %520
    %v523 = vmul.f32 %v24, %v516
    %v524 = vmul.f32 %v25, %v516
    %v525 = vmul.f32 %v26, %v521
    %v526 = vmul.f32 %v27, %v521
    %528 = vset.pattern.permute.xlu0 0
    %529 = vperm.xlu0 %528, %v497
    %v530 = vpop.permute.xlu0 %529
    %533 = vset.pattern.permute.xlu0 0
    %534 = vperm.xlu0 %533, %v498
    %v535 = vpop.permute.xlu0 %534
    %v537 = vadd.f32 %v523, %v530
    %v538 = vadd.f32 %v524, %v530
    %v539 = vadd.f32 %v525, %v535
    %v540 = vadd.f32 %v526, %v535
    %v541 = vtanh.pop %v537
    %v542 = vtanh.pop %v538
    %v543 = vtanh.pop %v539
    %v544 = vtanh.pop %v540
    %v545 = vadd.f32 %v541, 1.0
    %v546 = vadd.f32 %v542, 1.0
    %v547 = vadd.f32 %v543, 1.0
    %v548 = vadd.f32 %v544, 1.0
    %v549 = vmul.f32 %v545, %v24
    %v550 = vmul.f32 %v546, %v25
    %v551 = vmul.f32 %v547, %v26
    %v552 = vmul.f32 %v548, %v27
    %554 = vset.pattern.permute.xlu0 0
    %555 = vperm.xlu0 %554, %v475
    %v556 = vpop.permute.xlu0 %555
    %559 = vset.pattern.permute.xlu0 0
    %560 = vperm.xlu0 %559, %v476
    %v561 = vpop.permute.xlu0 %560
    %v563 = vmul.f32 %v28, %v556
    %v564 = vmul.f32 %v29, %v556
    %v565 = vmul.f32 %v30, %v561
    %v566 = vmul.f32 %v31, %v561
    %568 = vset.pattern.permute.xlu0 0
    %569 = vperm.xlu0 %568, %v499
    %v570 = vpop.permute.xlu0 %569
    %573 = vset.pattern.permute.xlu0 0
    %574 = vperm.xlu0 %573, %v500
    %v575 = vpop.permute.xlu0 %574
    %v577 = vadd.f32 %v563, %v570
    %v578 = vadd.f32 %v564, %v570
    %v579 = vadd.f32 %v565, %v575
    %v580 = vadd.f32 %v566, %v575
    %v581 = vtanh.pop %v577
    %v582 = vtanh.pop %v578
    %v583 = vtanh.pop %v579
    %v584 = vtanh.pop %v580
    %v585 = vadd.f32 %v581, 1.0
    %v586 = vadd.f32 %v582, 1.0
    %v587 = vadd.f32 %v583, 1.0
    %v588 = vadd.f32 %v584, 1.0
    %v589 = vmul.f32 %v585, %v28
    %v590 = vmul.f32 %v586, %v29
    %v591 = vmul.f32 %v587, %v30
    %v592 = vmul.f32 %v588, %v31
    %594 = vset.pattern.permute.xlu0 0
    %595 = vperm.xlu0 %594, %v505
    %v596 = vpop.permute.xlu0 %595
    %599 = vset.pattern.permute.xlu0 0
    %600 = vperm.xlu0 %599, %v506
    %v601 = vpop.permute.xlu0 %600
    %v603 = vmul.f32 %v596, %v549
    %v604 = vmul.f32 %v596, %v550
    %v605 = vmul.f32 %v601, %v551
    %v606 = vmul.f32 %v601, %v552
    %608 = vset.pattern.permute.xlu0 0
    %609 = vperm.xlu0 %608, %v511
    %v610 = vpop.permute.xlu0 %609
    %613 = vset.pattern.permute.xlu0 0
    %614 = vperm.xlu0 %613, %v512
    %v615 = vpop.permute.xlu0 %614
    %v617 = vmul.f32 %v610, %v589
    %v618 = vmul.f32 %v610, %v590
    %v619 = vmul.f32 %v615, %v591
    %v620 = vmul.f32 %v615, %v592
    %v621 = vadd.f32 %v603, %v617
    %v622 = vadd.f32 %v604, %v618
    %v623 = vadd.f32 %v605, %v619
    %v624 = vadd.f32 %v606, %v620
    %625 = vst [vmem:[#allocation2] sm:$0xff] %v621
    %626 = vst [vmem:[#allocation2 + $0x8] sm:$0xff] %v622
    %627 = vst [vmem:[#allocation2 + $0x10] sm:$0xff] %v623
    %628 = vst [vmem:[#allocation2 + $0x18] sm:$0xff] %v624
    %630 = vset.pattern.permute.xlu0 0
    %631 = vperm.xlu0 %630, %v507
    %v632 = vpop.permute.xlu0 %631
    %635 = vset.pattern.permute.xlu0 0
    %636 = vperm.xlu0 %635, %v508
    %v637 = vpop.permute.xlu0 %636
    %v639 = vmul.f32 %v632, %v589
    %v640 = vmul.f32 %v632, %v590
    %v641 = vmul.f32 %v637, %v591
    %v642 = vmul.f32 %v637, %v592
    %644 = vset.pattern.permute.xlu0 0
    %645 = vperm.xlu0 %644, %v509
    %v646 = vpop.permute.xlu0 %645
    %649 = vset.pattern.permute.xlu0 0
    %650 = vperm.xlu0 %649, %v510
    %v651 = vpop.permute.xlu0 %650
    %v653 = vmul.f32 %v646, %v549
    %v654 = vmul.f32 %v646, %v550
    %v655 = vmul.f32 %v651, %v551
    %v656 = vmul.f32 %v651, %v552
    %v657 = vadd.f32 %v639, %v653
    %v658 = vadd.f32 %v640, %v654
    %v659 = vadd.f32 %v641, %v655
    %v660 = vadd.f32 %v642, %v656
    %661 = vst [vmem:[#allocation2 + $0x20] sm:$0xff] %v657
    %662 = vst [vmem:[#allocation2 + $0x28] sm:$0xff] %v658
    %663 = vst [vmem:[#allocation2 + $0x30] sm:$0xff] %v659
    %664 = vst [vmem:[#allocation2 + $0x38] sm:$0xff] %v660
    %666 = vset.pattern.permute.xlu0 0
    %667 = vperm.xlu0 %666, %v477
    %v668 = vpop.permute.xlu0 %667
    %671 = vset.pattern.permute.xlu0 0
    %672 = vperm.xlu0 %671, %v478
    %v673 = vpop.permute.xlu0 %672
    %v675 = vmul.f32 %v32, %v668
    %v676 = vmul.f32 %v33, %v668
    %v677 = vmul.f32 %v34, %v673
    %v678 = vmul.f32 %v35, %v673
    %680 = vset.pattern.permute.xlu0 0
    %681 = vperm.xlu0 %680, %v501
    %v682 = vpop.permute.xlu0 %681
    %685 = vset.pattern.permute.xlu0 0
    %686 = vperm.xlu0 %685, %v502
    %v687 = vpop.permute.xlu0 %686
    %v689 = vadd.f32 %v675, %v682
    %v690 = vadd.f32 %v676, %v682
    %v691 = vadd.f32 %v677, %v687
    %v692 = vadd.f32 %v678, %v687
    %v693 = vtanh.pop %v689
    %v694 = vtanh.pop %v690
    %v695 = vtanh.pop %v691
    %v696 = vtanh.pop %v692
    %v697 = vadd.f32 %v693, 1.0
    %v698 = vadd.f32 %v694, 1.0
    %v699 = vadd.f32 %v695, 1.0
    %v700 = vadd.f32 %v696, 1.0
    %v701 = vmul.f32 %v697, %v32
    %v702 = vmul.f32 %v698, %v33
    %v703 = vmul.f32 %v699, %v34
    %v704 = vmul.f32 %v700, %v35
    %706 = vset.pattern.permute.xlu0 0
    %707 = vperm.xlu0 %706, %v479
    %v708 = vpop.permute.xlu0 %707
    %711 = vset.pattern.permute.xlu0 0
    %712 = vperm.xlu0 %711, %v480
    %v713 = vpop.permute.xlu0 %712
    %v715 = vmul.f32 %v36, %v708
    %v716 = vmul.f32 %v37, %v708
    %v717 = vmul.f32 %v38, %v713
    %v718 = vmul.f32 %v39, %v713
    %720 = vset.pattern.permute.xlu0 0
    %721 = vperm.xlu0 %720, %v503
    %v722 = vpop.permute.xlu0 %721
    %725 = vset.pattern.permute.xlu0 0
    %726 = vperm.xlu0 %725, %v504
    %v727 = vpop.permute.xlu0 %726
    %v729 = vadd.f32 %v715, %v722
    %v730 = vadd.f32 %v716, %v722
    %v731 = vadd.f32 %v717, %v727
    %v732 = vadd.f32 %v718, %v727
    %v733 = vtanh.pop %v729
    %v734 = vtanh.pop %v730
    %v735 = vtanh.pop %v731
    %v736 = vtanh.pop %v732
    %v737 = vadd.f32 %v733, 1.0
    %v738 = vadd.f32 %v734, 1.0
    %v739 = vadd.f32 %v735, 1.0
    %v740 = vadd.f32 %v736, 1.0
    %v741 = vmul.f32 %v737, %v36
    %v742 = vmul.f32 %v738, %v37
    %v743 = vmul.f32 %v739, %v38
    %v744 = vmul.f32 %v740, %v39
    %v745 = vmul.f32 %v596, %v701
    %v746 = vmul.f32 %v596, %v702
    %v747 = vmul.f32 %v601, %v703
    %v748 = vmul.f32 %v601, %v704
    %v749 = vmul.f32 %v610, %v741
    %v750 = vmul.f32 %v610, %v742
    %v751 = vmul.f32 %v615, %v743
    %v752 = vmul.f32 %v615, %v744
    %v753 = vadd.f32 %v745, %v749
    %v754 = vadd.f32 %v746, %v750
    %v755 = vadd.f32 %v747, %v751
    %v756 = vadd.f32 %v748, %v752
    %757 = vst [vmem:[#allocation2 + $0x40] sm:$0xff] %v753
    %758 = vst [vmem:[#allocation2 + $0x48] sm:$0xff] %v754
    %759 = vst [vmem:[#allocation2 + $0x50] sm:$0xff] %v755
    %760 = vst [vmem:[#allocation2 + $0x58] sm:$0xff] %v756
    %v761 = vmul.f32 %v632, %v741
    %v762 = vmul.f32 %v632, %v742
    %v763 = vmul.f32 %v637, %v743
    %v764 = vmul.f32 %v637, %v744
    %v765 = vmul.f32 %v646, %v701
    %v766 = vmul.f32 %v646, %v702
    %v767 = vmul.f32 %v651, %v703
    %v768 = vmul.f32 %v651, %v704
    %v769 = vadd.f32 %v761, %v765
    %v770 = vadd.f32 %v762, %v766
    %v771 = vadd.f32 %v763, %v767
    %v772 = vadd.f32 %v764, %v768
    %773 = vst [vmem:[#allocation2 + $0x60] sm:$0xff] %v769
    %774 = vst [vmem:[#allocation2 + $0x68] sm:$0xff] %v770
    %775 = vst [vmem:[#allocation2 + $0x70] sm:$0xff] %v771
    %776 = vst [vmem:[#allocation2 + $0x78] sm:$0xff] %v772
    // Predicated region
    $region26: #{tpu_custom_call.1} parent=1 // pred_check
      _
    $region27: #{tpu_custom_call.1} parent=1 // pred_check_branch
      %778 = sbr.rel (0) target = $region29
    $region28: #{tpu_custom_call.1} parent=1 // pred_region
      %s780 = ssub.s32 2048, 2048
      %781 = vsyncadd [#allocation3], %s780
      %s782 = sshll.u32 [#allocation2], 4
      %s783 = int_to_ptr.vmem [resolvable:$true] %s782
      %788 = dma.vmem_to_hbm [thread:$0]  %s783, 2048, %s6, [#allocation3], 256, 256, 16
    $region29: #{tpu_custom_call.1} parent=1 // pred_fallthru
      _
    // Predicated region
    $region30: #{tpu_custom_call.1} parent=1 // pred_check
      _
    $region31: #{tpu_custom_call.1} parent=1 // pred_check_branch
      %790 = sbr.rel (0) target = $region33
    $region32: #{tpu_custom_call.1} parent=1 // pred_region
      %791 = dma.done [#allocation3], 2048
    $region33: #{tpu_custom_call.1} parent=1 // pred_fallthru
      _
    %792 = vsyncpa [#allocation3], 1

</llo_original>
